<compile_context>
chip_gen: v6e
topology: v6e:2x2x1
jax: 0.10.0
libtpu: 0.0.40
codegen_flags: <defaults>
</compile_context>

<pallas_src>
import jax
import jax.numpy as jnp
from jax.experimental import pallas as pl
from jax.experimental.pallas import tpu as pltpu


_ONE_HOT_MAX_T = 2048  # above this, one-hot contraction is no longer worth it


# ---------------------------------------------------------------------------
# Stage 1: fold the whole per-title MLP into a (T_pad, 1) f32 score table.
# ---------------------------------------------------------------------------
def fold_kernel(emb_ref, w1_ref, b1_ref, w2_ref, b2_ref, tab_ref):
    # emb: (TT, E)  w1: (H, E)  b1: (1, H)  w2: (1, H)  b2: (1, 1)  tab: (TT, 1)
    # Contract the shared E axis of both operands so the tiny (8,16) weight is
    # the transposed side (review item: no (TT,16) activation transpose).
    h = jax.lax.dot_general(
        emb_ref[...], w1_ref[...],
        dimension_numbers=(((1,), (1,)), ((), ())),
        preferred_element_type=jnp.float32)            # (TT, H)
    h = jnp.maximum(h + b1_ref[...], 0.0)
    tab_ref[...] = jnp.sum(h * w2_ref[...], axis=1, keepdims=True) + b2_ref[...]


# ---------------------------------------------------------------------------
# Stage 2a (hot path, small tables): lane-dense one-hot gather.
# ---------------------------------------------------------------------------
def gather_scores_onehot_kernel(ids_ref, tab_ref, out_ref):
    # ids: (1, TB) i32   tab: (T_pad, 1) f32   out: (1, TB) f32
    t_pad = tab_ref.shape[0]
    tb = ids_ref.shape[1]
    ids = ids_ref[...]                                              # (1, TB)
    t_iota = jax.lax.broadcasted_iota(jnp.int32, (t_pad, tb), 0)    # title ids
    picked = jnp.where(t_iota == ids, tab_ref[...], 0.0)            # (T_pad, TB)
    out_ref[...] = jnp.sum(picked, axis=0, keepdims=True)           # (1, TB)


# ---------------------------------------------------------------------------
# Stage 2b (large tables): row gather (batch on sublanes).
# ---------------------------------------------------------------------------
def gather_scores_rows_kernel(ids_ref, tab_ref, out_ref):
    # ids: (1, TB) i32   tab: (T_pad, 1) f32   out: (TB, 1) f32
    ids = ids_ref[0, :]
    out_ref[...] = jnp.take(tab_ref[...], ids, axis=0, mode="clip")


# ---------------------------------------------------------------------------
# Helpers
# ---------------------------------------------------------------------------
def _round_up(x, m):
    return ((x + m - 1) // m) * m


def _pick_batch_tile(B, tile_b):
    tile_b = max(128, (int(tile_b) // 128) * 128)
    if B <= 128:
        return 128
    if B <= 2 * tile_b:
        # Give v7x's second TensorCore something to do: aim for >= 2 grid steps.
        return min(tile_b, _round_up(pl.cdiv(B, 2), 128))
    return tile_b


def _pick_vmem_limit(resident_bytes):
    # Generation-aware limit: size from the actual footprint, never above
    # 3/4 of physical VMEM (v5e/v6e: 128 MiB, v7x: 64 MiB).
    phys = 64 << 20
    try:
        phys = int(pltpu.get_tpu_info().vmem_capacity_bytes)
    except Exception:
        pass
    return int(min(phys * 3 // 4, max(32 << 20, 2 * int(resident_bytes))))


# ---------------------------------------------------------------------------
# Wrappers
# ---------------------------------------------------------------------------
def precompute_title_scores(emb_table, w1, b1, w2, b2):
    """One-shot fold: score_tab[t] = relu(emb[t] @ W1.T + b1) @ W2.T + b2.

    Returns a (T_pad, 1) f32 table (T_pad >= num_titles, lane/sublane padded).
    If the weights are static across calls, cache this and pass it to
    learning_to_rank_forward(score_table=...).
    """
    T, E = emb_table.shape
    H = w1.shape[0]
    if T <= 1024:
        TT = _round_up(T, 128)
        T_pad = TT
    else:
        TT = 1024
        T_pad = _round_up(T, TT)

    emb = emb_table.astype(jnp.float32)
    if T_pad != T:
        emb = jnp.pad(emb, ((0, T_pad - T), (0, 0)))     # padded titles unused
    b1_row = b1.reshape(1, H).astype(jnp.float32)
    w2_row = w2.reshape(1, H).astype(jnp.float32)        # (1, H)
    b2_2d = b2.reshape(1, 1).astype(jnp.float32)

    return pl.pallas_call(
        fold_kernel,
        out_shape=jax.ShapeDtypeStruct((T_pad, 1), jnp.float32),
        grid=(T_pad // TT,),
        in_specs=[
            pl.BlockSpec((TT, E), lambda i: (i, 0)),     # embedding tile
            pl.BlockSpec((H, E), lambda i: (0, 0)),      # W1 (PyTorch layout)
            pl.BlockSpec((1, H), lambda i: (0, 0)),      # b1 row
            pl.BlockSpec((1, H), lambda i: (0, 0)),      # W2 row
            pl.BlockSpec((1, 1), lambda i: (0, 0)),      # b2
        ],
        out_specs=pl.BlockSpec((TT, 1), lambda i: (i, 0)),
        compiler_params=pltpu.CompilerParams(
            dimension_semantics=("parallel",)),
        cost_estimate=pl.CostEstimate(
            flops=2 * T_pad * (E * H + H),
            transcendentals=0,
            bytes_accessed=T_pad * (E + 1) * 4 + (H * E + 2 * H + 1) * 4),
    )(emb, w1.astype(jnp.float32), b1_row, w2_row, b2_2d)


def learning_to_rank_forward(title_ids, emb_table, w1, b1, w2, b2,
                             *, tile_b=8192, score_table=None):
    """title_ids: (B,) int -> scores: (B,) f32  (== score.view(batch_size))."""
    B = title_ids.shape[0]
    if score_table is None:
        score_table = precompute_title_scores(emb_table, w1, b1, w2, b2)
    T_pad = score_table.shape[0]

    # NOTE: nn.Embedding raises on out-of-range ids; here out-of-range ids are
    # silently scored 0 (one-hot path) or clamped (row-gather path).
    ids = title_ids.astype(jnp.int32)

    use_onehot = T_pad <= _ONE_HOT_MAX_T
    if use_onehot:
        # Bound the per-tile (T_pad, TB) one-hot intermediate to ~4 MiB of f32.
        tile_b = min(tile_b, max(128, ((4 << 20) // (4 * T_pad)) // 128 * 128))

    tile = _pick_batch_tile(B, tile_b)
    num_tiles = pl.cdiv(B, tile)
    B_pad = tile * num_tiles
    if B_pad != B:
        ids = jnp.pad(ids, (0, B_pad - B))               # padded lanes discarded
    ids_row = ids.reshape(1, B_pad)

    resident = 2 * T_pad * 4 + 2 * 2 * tile * 4          # table + id/out tiles
    if use_onehot:
        resident += T_pad * tile * 4                     # one-hot spill headroom
    params = pltpu.CompilerParams(
        dimension_semantics=("parallel",),
        vmem_limit_bytes=_pick_vmem_limit(resident))

    if use_onehot:
        out = pl.pallas_call(
            gather_scores_onehot_kernel,
            out_shape=jax.ShapeDtypeStruct((1, B_pad), jnp.float32),
            grid=(num_tiles,),
            in_specs=[
                pl.BlockSpec((1, tile), lambda i: (0, i)),      # ids (lane-dense)
                pl.BlockSpec((T_pad, 1), lambda i: (0, 0)),     # folded score table
            ],
            out_specs=pl.BlockSpec((1, tile), lambda i: (0, i)),  # lane-dense out
            compiler_params=params,
            cost_estimate=pl.CostEstimate(
                flops=2 * T_pad * B_pad,
                transcendentals=0,
                bytes_accessed=B_pad * 8 + T_pad * 4),
        )(ids_row, score_table)
        return out[0, :B]

    # Large-table fallback: row gather, batch on sublanes.
    # TODO(synk): for tables too large for VMEM (>~3M titles) keep the score
    # table in HBM (memory_space=pl.ANY) and gather with scalar-prefetched ids
    # (PrefetchScalarGridSpec) + manual double-buffered make_async_copy.
    out = pl.pallas_call(
        gather_scores_rows_kernel,
        out_shape=jax.ShapeDtypeStruct((B_pad, 1), jnp.float32),
        grid=(num_tiles,),
        in_specs=[
            pl.BlockSpec((1, tile), lambda i: (0, i)),
            pl.BlockSpec((T_pad, 1), lambda i: (0, 0)),
        ],
        out_specs=pl.BlockSpec((tile, 1), lambda i: (i, 0)),
        compiler_params=params,
        cost_estimate=pl.CostEstimate(
            flops=B_pad,
            transcendentals=0,
            bytes_accessed=B_pad * 8 + T_pad * 4),
    )(ids_row, score_table)
    return out[:B, 0]


# ---------------------------------------------------------------------------
# Reference / demo
# ---------------------------------------------------------------------------
def init_params(key, num_titles, embedding_dim=16, hidden_dim=8):
    k0, k1, k2, k3, k4 = jax.random.split(key, 5)
    emb_table = jax.random.normal(k0, (num_titles, embedding_dim), jnp.float32)
    # nn.Linear layouts: weight (out, in), bias (out,)
    w1 = jax.random.normal(k1, (hidden_dim, embedding_dim), jnp.float32) * 0.1
    b1 = jax.random.normal(k2, (hidden_dim,), jnp.float32) * 0.1
    w2 = jax.random.normal(k3, (1, hidden_dim), jnp.float32) * 0.1
    b2 = jax.random.normal(k4, (1,), jnp.float32) * 0.1
    return emb_table, w1, b1, w2, b2


def reference_forward(title_ids, emb_table, w1, b1, w2, b2):
    emb = emb_table[title_ids]                 # (B, E)
    h = jnp.maximum(emb @ w1.T + b1, 0.0)      # (B, H)
    score = h @ w2.T + b2                      # (B, 1)
    return score.reshape(title_ids.shape[0])


if __name__ == "__main__":
    num_titles = 32
    batch = 8

    key = jax.random.PRNGKey(0)
    k_ids, k_params = jax.random.split(key)
    params = init_params(k_params, num_titles)
    title_ids = jax.random.randint(k_ids, (batch,), 0, num_titles, jnp.int32)

    scores = learning_to_rank_forward(title_ids, *params)
    scores = jax.block_until_ready(scores)

    ref = reference_forward(title_ids, *params)
    assert scores.shape == (batch,)
    assert jnp.allclose(scores, ref, atol=1e-5, rtol=1e-5), (scores, ref)

    print("KERNEL_OK")
</pallas_src>

<mosaic_0001>
module attributes {stable_mosaic.version = 11 : i64} {
  func.func @fold_kernel(%arg0: i32, %arg1: memref<128x16xf32, #tpu.memory_space<vmem>>, %arg2: memref<8x16xf32, #tpu.memory_space<vmem>>, %arg3: memref<1x8xf32, #tpu.memory_space<vmem>>, %arg4: memref<1x8xf32, #tpu.memory_space<vmem>>, %arg5: memref<1x1xf32, #tpu.memory_space<vmem>>, %arg6: memref<128x1xf32, #tpu.memory_space<vmem>>) attributes {dimension_semantics = [#tpu.dimension_semantics<parallel>], iteration_bounds = array<i64: 1>, scalar_prefetch = 0 : i64, scratch_operands = 0 : i64, tpu.core_type = #tpu.core_type<tc>, window_params = [{transform_indices = @transform_0, window_bounds = array<i64: 128, 16>}, {pipeline_mode = #tpu.pipeline_mode<synchronous>, transform_indices = @transform_1, window_bounds = array<i64: 8, 16>}, {pipeline_mode = #tpu.pipeline_mode<synchronous>, transform_indices = @transform_2, window_bounds = array<i64: 1, 8>}, {pipeline_mode = #tpu.pipeline_mode<synchronous>, transform_indices = @transform_3, window_bounds = array<i64: 1, 8>}, {pipeline_mode = #tpu.pipeline_mode<synchronous>, transform_indices = @transform_4, window_bounds = array<i64: 1, 1>}, {transform_indices = @transform_5, window_bounds = array<i64: 128, 1>}]} {
    %c0 = arith.constant 0 : index
    %c0_0 = arith.constant 0 : index
    %0 = vector.load %arg1[%c0, %c0_0] : memref<128x16xf32, #tpu.memory_space<vmem>>, vector<128x16xf32>
    %c0_1 = arith.constant 0 : index
    %c0_2 = arith.constant 0 : index
    %1 = vector.load %arg2[%c0_1, %c0_2] : memref<8x16xf32, #tpu.memory_space<vmem>>, vector<8x16xf32>
    %cst = arith.constant dense<0.000000e+00> : vector<128x8xf32>
    %2 = tpu.matmul %0, %1, %cst {dimension_numbers = #tpu.dot_dimension_numbers<[1], [1], [0], [0], [0, 0, 1, 0], [], []>} : vector<128x16xf32>, vector<8x16xf32>, vector<128x8xf32> -> vector<128x8xf32>
    %c0_3 = arith.constant 0 : index
    %c0_4 = arith.constant 0 : index
    %3 = vector.load %arg3[%c0_3, %c0_4] : memref<1x8xf32, #tpu.memory_space<vmem>>, vector<1x8xf32>
    %4 = vector.broadcast %3 : vector<1x8xf32> to vector<128x8xf32>
    %5 = arith.addf %2, %4 : vector<128x8xf32>
    %cst_5 = arith.constant 0.000000e+00 : f32
    %6 = vector.broadcast %cst_5 : f32 to vector<128x8xf32>
    %7 = arith.maximumf %5, %6 : vector<128x8xf32>
    %c0_6 = arith.constant 0 : index
    %c0_7 = arith.constant 0 : index
    %8 = vector.load %arg4[%c0_6, %c0_7] : memref<1x8xf32, #tpu.memory_space<vmem>>, vector<1x8xf32>
    %9 = vector.broadcast %8 : vector<1x8xf32> to vector<128x8xf32>
    %10 = arith.mulf %7, %9 : vector<128x8xf32>
    %cst_8 = arith.constant dense<0.000000e+00> : vector<128xf32>
    %11 = vector.multi_reduction <add>, %10, %cst_8 [1] : vector<128x8xf32> to vector<128xf32>
    %12 = vector.shape_cast %11 : vector<128xf32> to vector<128x1xf32>
    %c0_9 = arith.constant 0 : index
    %c0_10 = arith.constant 0 : index
    %13 = vector.load %arg5[%c0_9, %c0_10] : memref<1x1xf32, #tpu.memory_space<vmem>>, vector<1x1xf32>
    %14 = vector.broadcast %13 : vector<1x1xf32> to vector<128x1xf32>
    %15 = arith.addf %12, %14 : vector<128x1xf32>
    %c0_11 = arith.constant 0 : index
    %c0_12 = arith.constant 0 : index
    %16 = vector.load %arg6[%c0_11, %c0_12] : memref<128x1xf32, #tpu.memory_space<vmem>>, vector<128x1xf32>
    tpu.vector_store %arg6[%c0_11, %c0_12], %15 {strides = array<i32>} : memref<128x1xf32, #tpu.memory_space<vmem>>, vector<128x1xf32>,
    return
  }
  func.func @transform_0(%arg0: i32) -> (i32, i32) {
    %c0_i32 = arith.constant 0 : i32
    %c0_i32_0 = arith.constant 0 : i32
    return %arg0, %c0_i32 : i32, i32
  }
  func.func @transform_1(%arg0: i32) -> (i32, i32) {
    %c0_i32 = arith.constant 0 : i32
    %c0_i32_0 = arith.constant 0 : i32
    %c0_i32_1 = arith.constant 0 : i32
    return %c0_i32, %c0_i32_0 : i32, i32
  }
  func.func @transform_2(%arg0: i32) -> (i32, i32) {
    %c0_i32 = arith.constant 0 : i32
    %c0_i32_0 = arith.constant 0 : i32
    %c0_i32_1 = arith.constant 0 : i32
    return %c0_i32, %c0_i32_0 : i32, i32
  }
  func.func @transform_3(%arg0: i32) -> (i32, i32) {
    %c0_i32 = arith.constant 0 : i32
    %c0_i32_0 = arith.constant 0 : i32
    %c0_i32_1 = arith.constant 0 : i32
    return %c0_i32, %c0_i32_0 : i32, i32
  }
  func.func @transform_4(%arg0: i32) -> (i32, i32) {
    %c0_i32 = arith.constant 0 : i32
    %c0_i32_0 = arith.constant 0 : i32
    %c0_i32_1 = arith.constant 0 : i32
    return %c0_i32, %c0_i32_0 : i32, i32
  }
  func.func @transform_5(%arg0: i32) -> (i32, i32) {
    %c0_i32 = arith.constant 0 : i32
    %c0_i32_0 = arith.constant 0 : i32
    return %arg0, %c0_i32 : i32, i32
  }
}

</mosaic_0001>

<llo_original>
// kernel: tpu_custom_call.1
$region0: #{tpu_custom_call.1}
  #allocation0 [shape = 'u32[]', space=smem, size = 0x4, offset = 0x4, fixed_abs, tag = 'smem constant byte address 0x4 - core index']
  #allocation1 [shape = 'u32[144,128]{1,0:T(1,128)}', space=vmem, size = 0x12000, scoped, tag = 'internal scratch']
  #allocation2 [shape = 'f32[1,1]{1,0:T(1,128)S(1)}', space=vmem, size = 0x200, scoped, tag = 'scoped memory for tpu_custom_call.1']
  %s0 = inlined_call_operand.vmem [shape: f32[128,16], index: 0, kind: input, shape index: {}]
  %s1 = inlined_call_operand.vmem [shape: f32[8,16], index: 1, kind: input, shape index: {}]
  %s2 = inlined_call_operand.vmem [shape: f32[1,8], index: 2, kind: input, shape index: {}]
  %s3 = inlined_call_operand.vmem [shape: f32[1,8], index: 3, kind: input, shape index: {}]
  %s4 = inlined_call_operand.<no memory space> [shape: f32[1,1], index: 4, kind: input, shape index: {}]
  %s5 = inlined_call_operand.vmem [shape: f32[128,1], index: 5, kind: output, shape index: {}]
  %s6 = sld [smem:[#allocation0]]
  $region30: #{tpu_custom_call.1} parent=0
    _
  %s8 = ssub.s32 1, %s6
  %s9 = scalar_select 0, %s8, %s6
  %v10 = vstv %s4
  %11 = vst [vmem:[#allocation2] sm:$0x1] %v10
  // Predicated region
  $region2: #{tpu_custom_call.1} parent=0 // pred_check
    _
  $region3: #{tpu_custom_call.1} parent=0 // pred_check_branch
    %13 = sbr.rel (0) target = $region5
  $region4: #{tpu_custom_call.1} parent=0 // pred_region
    _
  $region5: #{tpu_custom_call.1} parent=0 // pred_fallthru
    _
  // Predicated region
  $region6: #{tpu_custom_call.1} parent=0 // pred_check
    _
  $region7: #{tpu_custom_call.1} parent=0 // pred_check_branch
    %15 = sbr.rel (0) target = $region9
  $region8: #{tpu_custom_call.1} parent=0 // pred_region
    _
  $region9: #{tpu_custom_call.1} parent=0 // pred_fallthru
    _
  // Predicated region
  $region10: #{tpu_custom_call.1} parent=0 // pred_check
    _
  $region11: #{tpu_custom_call.1} parent=0 // pred_check_branch
    %17 = sbr.rel (0) target = $region13
  $region12: #{tpu_custom_call.1} parent=0 // pred_region
    _
  $region13: #{tpu_custom_call.1} parent=0 // pred_fallthru
    _
  // Predicated region
  $region14: #{tpu_custom_call.1} parent=0 // pred_check
    _
  $region15: #{tpu_custom_call.1} parent=0 // pred_check_branch
    %19 = sbr.rel (0) target = $region17
  $region16: #{tpu_custom_call.1} parent=0 // pred_region
    _
  $region17: #{tpu_custom_call.1} parent=0 // pred_fallthru
    _
  // Predicated region
  $region18: #{tpu_custom_call.1} parent=0 // pred_check
    _
  $region19: #{tpu_custom_call.1} parent=0 // pred_check_branch
    %21 = sbr.rel (0) target = $region21
  $region20: #{tpu_custom_call.1} parent=0 // pred_region
    _
  $region21: #{tpu_custom_call.1} parent=0 // pred_fallthru
    _
  %v22 = vld [vmem:[%s0] sm:$0xff]
  %v23 = vld [vmem:[%s0 + $0x8] sm:$0xff]
  %v24 = vld [vmem:[%s0 + $0x10] sm:$0xff]
  %v25 = vld [vmem:[%s0 + $0x18] sm:$0xff]
  %v26 = vld [vmem:[%s0 + $0x20] sm:$0xff]
  %v27 = vld [vmem:[%s0 + $0x28] sm:$0xff]
  %v28 = vld [vmem:[%s0 + $0x30] sm:$0xff]
  %v29 = vld [vmem:[%s0 + $0x38] sm:$0xff]
  %v30 = vld [vmem:[%s0 + $0x40] sm:$0xff]
  %v31 = vld [vmem:[%s0 + $0x48] sm:$0xff]
  %v32 = vld [vmem:[%s0 + $0x50] sm:$0xff]
  %v33 = vld [vmem:[%s0 + $0x58] sm:$0xff]
  %v34 = vld [vmem:[%s0 + $0x60] sm:$0xff]
  %v35 = vld [vmem:[%s0 + $0x68] sm:$0xff]
  %v36 = vld [vmem:[%s0 + $0x70] sm:$0xff]
  %v37 = vld [vmem:[%s0 + $0x78] sm:$0xff]
  %v38 = vld [vmem:[%s1] sm:$0xff]
  %v39 = vld [vmem:[%s2] sm:$0x1]
  %v41 = vlaneseq
  %v42 = vshrl.u32 %v41, 7
  %v43 = vsub.s32 0, %v42
  %v44 = vrot.slane %v39, %v43
  %vm46 = vcmask 130048
  %v48 = vsel %vm46, %v22, 0
  %v51 = vsel %vm46, %v23, 0
  %v54 = vsel %vm46, %v24, 0
  %v57 = vsel %vm46, %v25, 0
  %v60 = vsel %vm46, %v26, 0
  %v63 = vsel %vm46, %v27, 0
  %v66 = vsel %vm46, %v28, 0
  %v69 = vsel %vm46, %v29, 0
  %v72 = vsel %vm46, %v30, 0
  %v75 = vsel %vm46, %v31, 0
  %v78 = vsel %vm46, %v32, 0
  %v81 = vsel %vm46, %v33, 0
  %v84 = vsel %vm46, %v34, 0
  %v87 = vsel %vm46, %v35, 0
  %v90 = vsel %vm46, %v36, 0
  %v93 = vsel %vm46, %v37, 0
  %v96 = vsel %vm46, %v38, 0
  %98 = vmatprep.subr.mxu0 0.0
  %99 = vmatpush1.xpose.msra.mxu0 0.0
  %100 = vmatprep.subr.mxu0 0.0
  %101 = vmatpush1.xpose.msra.mxu0 0.0
  %102 = vmatprep.subr.mxu0 0.0
  %103 = vmatpush1.xpose.msra.mxu0 0.0
  %104 = vmatprep.subr.mxu0 0.0
  %105 = vmatpush1.xpose.msra.mxu0 0.0
  %106 = vmatprep.subr.mxu0 0.0
  %107 = vmatpush1.xpose.msra.mxu0 0.0
  %108 = vmatprep.subr.mxu0 0.0
  %109 = vmatpush1.xpose.msra.mxu0 0.0
  %110 = vmatprep.subr.mxu0 0.0
  %111 = vmatpush1.xpose.msra.mxu0 0.0
  %112 = vmatprep.subr.mxu0 0.0
  %113 = vmatpush1.xpose.msra.mxu0 0.0
  %114 = vmatprep.subr.mxu0 0.0
  %115 = vmatpush1.xpose.msra.mxu0 0.0
  %116 = vmatprep.subr.mxu0 0.0
  %117 = vmatpush1.xpose.msra.mxu0 0.0
  %118 = vmatprep.subr.mxu0 0.0
  %119 = vmatpush1.xpose.msra.mxu0 0.0
  %120 = vmatprep.subr.mxu0 0.0
  %121 = vmatpush1.xpose.msra.mxu0 0.0
  %122 = vmatprep.subr.mxu0 0.0
  %123 = vmatpush1.xpose.msra.mxu0 0.0
  %124 = vmatprep.subr.mxu0 0.0
  %125 = vmatpush1.xpose.msra.mxu0 0.0
  %126 = vmatprep.subr.mxu0 0.0
  %127 = vmatpush1.xpose.msra.mxu0 0.0
  %128 = vmatprep.subr.mxu0 0.0
  %129 = vmatpush1.xpose.msra.mxu0 %v96
  %130 = vmatprep.subr.mxu0 0.0
  %131 = vmatpush2.xpose.msra.mxu0 0.0
  %132 = vmatprep.subr.mxu0 0.0
  %133 = vmatpush2.xpose.msra.mxu0 0.0
  %134 = vmatprep.subr.mxu0 0.0
  %135 = vmatpush2.xpose.msra.mxu0 0.0
  %136 = vmatprep.subr.mxu0 0.0
  %137 = vmatpush2.xpose.msra.mxu0 0.0
  %138 = vmatprep.subr.mxu0 0.0
  %139 = vmatpush2.xpose.msra.mxu0 0.0
  %140 = vmatprep.subr.mxu0 0.0
  %141 = vmatpush2.xpose.msra.mxu0 0.0
  %142 = vmatprep.subr.mxu0 0.0
  %143 = vmatpush2.xpose.msra.mxu0 0.0
  %144 = vmatprep.subr.mxu0 0.0
  %145 = vmatpush2.xpose.msra.mxu0 0.0
  %146 = vmatprep.subr.mxu0 0.0
  %147 = vmatpush2.xpose.msra.mxu0 0.0
  %148 = vmatprep.subr.mxu0 0.0
  %149 = vmatpush2.xpose.msra.mxu0 0.0
  %150 = vmatprep.subr.mxu0 0.0
  %151 = vmatpush2.xpose.msra.mxu0 0.0
  %152 = vmatprep.subr.mxu0 0.0
  %153 = vmatpush2.xpose.msra.mxu0 0.0
  %154 = vmatprep.subr.mxu0 0.0
  %155 = vmatpush2.xpose.msra.mxu0 0.0
  %156 = vmatprep.subr.mxu0 0.0
  %157 = vmatpush2.xpose.msra.mxu0 0.0
  %158 = vmatprep.subr.mxu0 0.0
  %159 = vmatpush2.xpose.msra.mxu0 0.0
  %160 = vmatprep.subr.mxu0 0.0
  %161 = vmatpush2.xpose.msra.mxu0 0.0
  %162 = vmatprep.mubr.f32.mxu0 0.0
  %163 = vmatmul.mubr.f32.gmra.mxu0 %v48
  %v164 = vpop.f32.mrf.mxu0
  %v165 = vadd.f32 %v44, %v164
  %v166 = vpop.f32.mrf.mxu0
  %167 = vmatprep.mubr.f32.mxu0 0.0
  %168 = vmatmul.mubr.f32.gmra.mxu0 %v51
  %v169 = vpop.f32.mrf.mxu0
  %v170 = vadd.f32 %v44, %v169
  %v171 = vpop.f32.mrf.mxu0
  %172 = vmatprep.mubr.f32.mxu0 0.0
  %173 = vmatmul.mubr.f32.gmra.mxu0 %v54
  %v174 = vpop.f32.mrf.mxu0
  %v175 = vadd.f32 %v44, %v174
  %v176 = vpop.f32.mrf.mxu0
  %177 = vmatprep.mubr.f32.mxu0 0.0
  %178 = vmatmul.mubr.f32.gmra.mxu0 %v57
  %v179 = vpop.f32.mrf.mxu0
  %v180 = vadd.f32 %v44, %v179
  %v181 = vpop.f32.mrf.mxu0
  %182 = vmatprep.mubr.f32.mxu0 0.0
  %183 = vmatmul.mubr.f32.gmra.mxu0 %v60
  %v184 = vpop.f32.mrf.mxu0
  %v185 = vadd.f32 %v44, %v184
  %v186 = vpop.f32.mrf.mxu0
  %187 = vmatprep.mubr.f32.mxu0 0.0
  %188 = vmatmul.mubr.f32.gmra.mxu0 %v63
  %v189 = vpop.f32.mrf.mxu0
  %v190 = vadd.f32 %v44, %v189
  %v191 = vpop.f32.mrf.mxu0
  %192 = vmatprep.mubr.f32.mxu0 0.0
  %193 = vmatmul.mubr.f32.gmra.mxu0 %v66
  %v194 = vpop.f32.mrf.mxu0
  %v195 = vadd.f32 %v44, %v194
  %v196 = vpop.f32.mrf.mxu0
  %197 = vmatprep.mubr.f32.mxu0 0.0
  %198 = vmatmul.mubr.f32.gmra.mxu0 %v69
  %v199 = vpop.f32.mrf.mxu0
  %v200 = vadd.f32 %v44, %v199
  %v201 = vpop.f32.mrf.mxu0
  %202 = vmatprep.mubr.f32.mxu0 0.0
  %203 = vmatmul.mubr.f32.gmra.mxu0 %v72
  %v204 = vpop.f32.mrf.mxu0
  %v205 = vadd.f32 %v44, %v204
  %v206 = vpop.f32.mrf.mxu0
  %207 = vmatprep.mubr.f32.mxu0 0.0
  %208 = vmatmul.mubr.f32.gmra.mxu0 %v75
  %v209 = vpop.f32.mrf.mxu0
  %v210 = vadd.f32 %v44, %v209
  %v211 = vpop.f32.mrf.mxu0
  %212 = vmatprep.mubr.f32.mxu0 0.0
  %213 = vmatmul.mubr.f32.gmra.mxu0 %v78
  %v214 = vpop.f32.mrf.mxu0
  %v215 = vadd.f32 %v44, %v214
  %v216 = vpop.f32.mrf.mxu0
  %217 = vmatprep.mubr.f32.mxu0 0.0
  %218 = vmatmul.mubr.f32.gmra.mxu0 %v81
  %v219 = vpop.f32.mrf.mxu0
  %v220 = vadd.f32 %v44, %v219
  %v221 = vpop.f32.mrf.mxu0
  %222 = vmatprep.mubr.f32.mxu0 0.0
  %223 = vmatmul.mubr.f32.gmra.mxu0 %v84
  %v224 = vpop.f32.mrf.mxu0
  %v225 = vadd.f32 %v44, %v224
  %v226 = vpop.f32.mrf.mxu0
  %227 = vmatprep.mubr.f32.mxu0 0.0
  %228 = vmatmul.mubr.f32.gmra.mxu0 %v87
  %v229 = vpop.f32.mrf.mxu0
  %v230 = vadd.f32 %v44, %v229
  %v231 = vpop.f32.mrf.mxu0
  %232 = vmatprep.mubr.f32.mxu0 0.0
  %233 = vmatmul.mubr.f32.gmra.mxu0 %v90
  %v234 = vpop.f32.mrf.mxu0
  %v235 = vadd.f32 %v44, %v234
  %v236 = vpop.f32.mrf.mxu0
  %237 = vmatprep.mubr.f32.mxu0 0.0
  %238 = vmatmul.mubr.f32.gmra.mxu0 %v93
  %v239 = vpop.f32.mrf.mxu0
  %v240 = vadd.f32 %v44, %v239
  %v241 = vpop.f32.mrf.mxu0
  %242 = vdwg.mxu0
  %v243 = vmax.f32 %v165, 0.0
  %v244 = vmax.f32 %v170, 0.0
  %v245 = vmax.f32 %v175, 0.0
  %v246 = vmax.f32 %v180, 0.0
  %v247 = vmax.f32 %v185, 0.0
  %v248 = vmax.f32 %v190, 0.0
  %v249 = vmax.f32 %v195, 0.0
  %v250 = vmax.f32 %v200, 0.0
  %v251 = vmax.f32 %v205, 0.0
  %v252 = vmax.f32 %v210, 0.0
  %v253 = vmax.f32 %v215, 0.0
  %v254 = vmax.f32 %v220, 0.0
  %v255 = vmax.f32 %v225, 0.0
  %v256 = vmax.f32 %v230, 0.0
  %v257 = vmax.f32 %v235, 0.0
  %v258 = vmax.f32 %v240, 0.0
  %v259 = vld [vmem:[%s3] sm:$0x1]
  %v261 = vlaneseq
  %v262 = vshrl.u32 %v261, 7
  %v263 = vsub.s32 0, %v262
  %v264 = vrot.slane %v259, %v263
  %v266 = vmul.f32 %v243, %v264
  %v267 = vmul.f32 %v244, %v264
  %v268 = vmul.f32 %v245, %v264
  %v269 = vmul.f32 %v246, %v264
  %v270 = vmul.f32 %v247, %v264
  %v271 = vmul.f32 %v248, %v264
  %v272 = vmul.f32 %v249, %v264
  %v273 = vmul.f32 %v250, %v264
  %v274 = vmul.f32 %v251, %v264
  %v275 = vmul.f32 %v252, %v264
  %v276 = vmul.f32 %v253, %v264
  %v277 = vmul.f32 %v254, %v264
  %v278 = vmul.f32 %v255, %v264
  %v279 = vmul.f32 %v256, %v264
  %v280 = vmul.f32 %v257, %v264
  %v281 = vmul.f32 %v258, %v264
  %vm282 = vcmask 64512
  %v283 = vsel %vm282, %v266, 0.0
  %284 = vadd.xlane.f32.xlu0 %v283
  %v285 = vpop.xlane.xlu0 %284
  %v286 = vsel %vm282, %v267, 0.0
  %287 = vadd.xlane.f32.xlu0 %v286
  %v288 = vpop.xlane.xlu0 %287
  %v289 = vsel %vm282, %v268, 0.0
  %290 = vadd.xlane.f32.xlu0 %v289
  %v291 = vpop.xlane.xlu0 %290
  %v292 = vsel %vm282, %v269, 0.0
  %293 = vadd.xlane.f32.xlu0 %v292
  %v294 = vpop.xlane.xlu0 %293
  %v295 = vsel %vm282, %v270, 0.0
  %296 = vadd.xlane.f32.xlu0 %v295
  %v297 = vpop.xlane.xlu0 %296
  %v298 = vsel %vm282, %v271, 0.0
  %299 = vadd.xlane.f32.xlu0 %v298
  %v300 = vpop.xlane.xlu0 %299
  %v301 = vsel %vm282, %v272, 0.0
  %302 = vadd.xlane.f32.xlu0 %v301
  %v303 = vpop.xlane.xlu0 %302
  %v304 = vsel %vm282, %v273, 0.0
  %305 = vadd.xlane.f32.xlu0 %v304
  %v306 = vpop.xlane.xlu0 %305
  %v307 = vsel %vm282, %v274, 0.0
  %308 = vadd.xlane.f32.xlu0 %v307
  %v309 = vpop.xlane.xlu0 %308
  %v310 = vsel %vm282, %v275, 0.0
  %311 = vadd.xlane.f32.xlu0 %v310
  %v312 = vpop.xlane.xlu0 %311
  %v313 = vsel %vm282, %v276, 0.0
  %314 = vadd.xlane.f32.xlu0 %v313
  %v315 = vpop.xlane.xlu0 %314
  %v316 = vsel %vm282, %v277, 0.0
  %317 = vadd.xlane.f32.xlu0 %v316
  %v318 = vpop.xlane.xlu0 %317
  %v319 = vsel %vm282, %v278, 0.0
  %320 = vadd.xlane.f32.xlu0 %v319
  %v321 = vpop.xlane.xlu0 %320
  %v322 = vsel %vm282, %v279, 0.0
  %323 = vadd.xlane.f32.xlu0 %v322
  %v324 = vpop.xlane.xlu0 %323
  %v325 = vsel %vm282, %v280, 0.0
  %326 = vadd.xlane.f32.xlu0 %v325
  %v327 = vpop.xlane.xlu0 %326
  %v328 = vsel %vm282, %v281, 0.0
  %329 = vadd.xlane.f32.xlu0 %v328
  %v330 = vpop.xlane.xlu0 %329
  %v331 = vld [vmem:[#allocation2] sm:$0x1]
  %v333 = vlaneseq
  %v334 = vshrl.u32 %v333, 7
  %v335 = vsub.s32 0, %v334
  %v336 = vrot.slane %v331, %v335
  %v338 = vadd.f32 %v285, %v336
  %v339 = vadd.f32 %v288, %v336
  %v340 = vadd.f32 %v291, %v336
  %v341 = vadd.f32 %v294, %v336
  %v342 = vadd.f32 %v297, %v336
  %v343 = vadd.f32 %v300, %v336
  %v344 = vadd.f32 %v303, %v336
  %v345 = vadd.f32 %v306, %v336
  %v346 = vadd.f32 %v309, %v336
  %v347 = vadd.f32 %v312, %v336
  %v348 = vadd.f32 %v315, %v336
  %v349 = vadd.f32 %v318, %v336
  %v350 = vadd.f32 %v321, %v336
  %v351 = vadd.f32 %v324, %v336
  %v352 = vadd.f32 %v327, %v336
  %v353 = vadd.f32 %v330, %v336
  %vm354 = vcmask 7168
  %355 = vst.msk [vmem:[%s5] sm:$0xff] %vm354, %v338
  %356 = vst.msk [vmem:[%s5 + $0x8] sm:$0xff] %vm354, %v339
  %357 = vst.msk [vmem:[%s5 + $0x10] sm:$0xff] %vm354, %v340
  %358 = vst.msk [vmem:[%s5 + $0x18] sm:$0xff] %vm354, %v341
  %359 = vst.msk [vmem:[%s5 + $0x20] sm:$0xff] %vm354, %v342
  %360 = vst.msk [vmem:[%s5 + $0x28] sm:$0xff] %vm354, %v343
  %361 = vst.msk [vmem:[%s5 + $0x30] sm:$0xff] %vm354, %v344
  %362 = vst.msk [vmem:[%s5 + $0x38] sm:$0xff] %vm354, %v345
  %363 = vst.msk [vmem:[%s5 + $0x40] sm:$0xff] %vm354, %v346
  %364 = vst.msk [vmem:[%s5 + $0x48] sm:$0xff] %vm354, %v347
  %365 = vst.msk [vmem:[%s5 + $0x50] sm:$0xff] %vm354, %v348
  %366 = vst.msk [vmem:[%s5 + $0x58] sm:$0xff] %vm354, %v349
  %367 = vst.msk [vmem:[%s5 + $0x60] sm:$0xff] %vm354, %v350
  %368 = vst.msk [vmem:[%s5 + $0x68] sm:$0xff] %vm354, %v351
  %369 = vst.msk [vmem:[%s5 + $0x70] sm:$0xff] %vm354, %v352
  %370 = vst.msk [vmem:[%s5 + $0x78] sm:$0xff] %vm354, %v353
  // Predicated region
  $region22: #{tpu_custom_call.1} parent=0 // pred_check
    _
  $region23: #{tpu_custom_call.1} parent=0 // pred_check_branch
    %372 = sbr.rel (0) target = $region25
  $region24: #{tpu_custom_call.1} parent=0 // pred_region
    _
  $region25: #{tpu_custom_call.1} parent=0 // pred_fallthru
    _
  // Predicated region
  $region26: #{tpu_custom_call.1} parent=0 // pred_check
    _
  $region27: #{tpu_custom_call.1} parent=0 // pred_check_branch
    %374 = sbr.rel (0) target = $region29
  $region28: #{tpu_custom_call.1} parent=0 // pred_region
    _
  $region29: #{tpu_custom_call.1} parent=0 // pred_fallthru
    _

</llo_original>
